<compile_context>
chip_gen: v6e
topology: v6e:2x2x1
jax: 0.10.0
libtpu: 0.0.40
codegen_flags: <defaults>
</compile_context>

<pallas_src>
import functools

import jax
import jax.numpy as jnp
from jax import lax
from jax.experimental import pallas as pl
from jax.experimental.pallas import tpu as pltpu


def _patch_kernel(x_ref, o_ref, *, C, num_patches_w, patch_size, W, nh_blk):
    # x_ref: (1, C, nh_blk, P*W*2)        -- nh_blk lane-dense patch-row strips
    # o_ref: (1, nh_blk, nw*C, P*P*2)     -- their patches, lane-dense
    P = patch_size
    P2 = 2 * P
    W2 = 2 * W
    nw = num_patches_w

    def emit(h, col_start, out_row_start):
        # Gather the P image rows of one patch directly from the VMEM-resident
        # input block; only one (C, P*P*2) group is live in vregs at a time.
        rows = [x_ref[0, :, h, pl.ds(col_start + r * W2, P2)]  # (C, P*2) each
                for r in range(P)]
        group = jnp.concatenate(rows, axis=-1)                 # (C, P*P*2)
        # Full 128-lane-multiple, unmasked store of this pw-group.
        o_ref[0, h, pl.ds(out_row_start, C), :] = group

    for h in range(nh_blk):                      # static; bounded by VMEM sizing
        if nw <= 8:
            for pw in range(nw):                 # small nw: fully unrolled
                emit(h, pw * P2, pw * C)
        else:
            # Large nw: bound code size / vreg live ranges with fori_loop.
            def body(pw, carry, h=h):
                emit(h,
                     pl.multiple_of(pw * P2, P2),
                     pl.multiple_of(pw * C, C))
                return carry
            lax.fori_loop(0, nw, body, 0, unroll=2)


def _vmem_budget_bytes():
    """Physical per-core VMEM minus headroom (v7x-safe fallback)."""
    cap = 64 * 2**20                     # smallest current generation (v7x)
    try:
        info = pltpu.get_tpu_info()
        cap = int(info.vmem_capacity_bytes)
    except Exception:
        pass
    return max(32 * 2**20, cap - 16 * 2**20)


def _choose_nh_block(nh, bytes_per_row, budget):
    """Largest legal nh block (full nh, or a multiple of 8 dividing nh) whose
    double-buffered in+out footprint fits the VMEM budget."""
    cands = [nh]
    d = 8 * (nh // 8)
    while d >= 8:
        if nh % d == 0 and d != nh:
            cands.append(d)
        d -= 8
    for nh_blk in cands:
        if 2 * nh_blk * bytes_per_row + (4 * 2**20) <= budget:
            return nh_blk
    # TODO(synk): if even the smallest legal block overflows VMEM, spill the
    # width axis onto a third grid dimension instead of oversizing the block.
    return cands[-1]


def patch_encoder_forward(x, patch_size):
    """x: (B, C, H, W, 2) float32 -> (B, C*num_patches, P, P, 2)."""
    B, C, H, W, two = x.shape
    assert two == 2
    assert H % patch_size == 0 and W % patch_size == 0, \
        "H and W must be divisible by patch size"
    P = patch_size
    nh = H // P
    nw = W // P
    num_patches = nh * nw

    strip = P * W * 2          # contiguous elements per patch-row per channel
    # Lane-dense DMA requirements (both sides).
    assert strip % 128 == 0, "patch_size * W * 2 must be a multiple of 128"
    # TODO(synk): for P < 8 pack several pw-groups along the lane axis instead
    # of asserting (P*P*2 < 128 would force masked vst.msk stores).
    assert (P * P * 2) % 128 == 0, "patch_size**2 * 2 must be a multiple of 128"

    itemsize = jnp.dtype(x.dtype).itemsize
    in_row_bytes = C * strip * itemsize
    out_row_bytes = nw * C * P * P * 2 * itemsize
    budget = _vmem_budget_bytes()
    nh_blk = _choose_nh_block(nh, in_row_bytes + out_row_bytes, budget)
    block_bytes = nh_blk * (in_row_bytes + out_row_bytes)
    # Clamp to physical-minus-headroom (v7x has only 64 MiB per core).
    vmem_limit = int(min(budget, max(32 * 2**20, 4 * block_bytes)))

    # Zero-copy view: (B, C, H, W, 2) -> (B, C, nh, P*W*2)  (row-major reshape).
    x_r = x.reshape(B, C, nh, strip)

    kernel = functools.partial(
        _patch_kernel, C=C, num_patches_w=nw, patch_size=P, W=W, nh_blk=nh_blk)

    # TODO(synk): if xprof still shows exposed DMA gaps between steps, try
    # pipeline_mode=pl.Buffered(3) on the input spec (check v7x VMEM first).
    out4 = pl.pallas_call(
        kernel,
        out_shape=jax.ShapeDtypeStruct((B, nh, nw * C, P * P * 2), x.dtype),
        grid=(B, nh // nh_blk),
        in_specs=[
            pl.BlockSpec((1, C, nh_blk, strip), lambda b, h: (b, 0, h, 0)),
        ],
        out_specs=pl.BlockSpec(
            (1, nh_blk, nw * C, P * P * 2), lambda b, h: (b, h, 0, 0)),
        compiler_params=pltpu.CompilerParams(
            dimension_semantics=("parallel", "parallel"),
            vmem_limit_bytes=vmem_limit),
    )(x_r)

    # Row-major order-preserving reshape -> metadata-only (no extra HBM copy).
    return out4.reshape(B, C * num_patches, P, P, 2)


def patch_encoder_reference(x, patch_size):
    """Pure-JAX mirror of the PyTorch forward, for verification."""
    B, C, H, W, _ = x.shape
    nh = H // patch_size
    nw = W // patch_size
    x = x.reshape(B, C, nh, patch_size, nw, patch_size, 2)
    x = jnp.transpose(x, (0, 2, 4, 1, 3, 5, 6))
    return x.reshape(B, C * nh * nw, patch_size, patch_size, 2)


if __name__ == "__main__":
    B, C, H, W = 2, 4, 16, 16
    patch_size = 8

    key = jax.random.PRNGKey(0)
    x = jax.random.normal(key, (B, C, H, W, 2), dtype=jnp.float32)

    out = patch_encoder_forward(x, patch_size)
    out = jax.block_until_ready(out)

    ref = patch_encoder_reference(x, patch_size)
    assert out.shape == (B, C * (H // patch_size) * (W // patch_size),
                         patch_size, patch_size, 2)
    assert jnp.array_equal(out, ref), "Pallas output mismatch vs reference"

    print("KERNEL_OK")
</pallas_src>

<mosaic_0001>
module attributes {stable_mosaic.version = 11 : i64} {
  func.func @_patch_kernel(%arg0: i32, %arg1: i32, %arg2: memref<1x4x2x256xf32, #tpu.memory_space<vmem>>, %arg3: memref<1x2x8x128xf32, #tpu.memory_space<vmem>>) attributes {dimension_semantics = [#tpu.dimension_semantics<parallel>, #tpu.dimension_semantics<parallel>], iteration_bounds = array<i64: 2, 1>, scalar_prefetch = 0 : i64, scratch_operands = 0 : i64, tpu.core_type = #tpu.core_type<tc>, window_params = [{transform_indices = @transform_0, window_bounds = array<i64: 1, 4, 2, 256>}, {transform_indices = @transform_1, window_bounds = array<i64: 1, 2, 8, 128>}]} {
    %c0 = arith.constant 0 : index
    %c0_0 = arith.constant 0 : index
    %c0_1 = arith.constant 0 : index
    %c0_2 = arith.constant 0 : index
    %0 = vector.load %arg2[%c0, %c0_0, %c0_1, %c0_2] : memref<1x4x2x256xf32, #tpu.memory_space<vmem>>, vector<1x4x1x16xf32>
    %1 = vector.shape_cast %0 : vector<1x4x1x16xf32> to vector<4x16xf32>
    %c0_3 = arith.constant 0 : index
    %c0_4 = arith.constant 0 : index
    %c0_5 = arith.constant 0 : index
    %c32 = arith.constant 32 : index
    %2 = vector.load %arg2[%c0_3, %c0_4, %c0_5, %c32] : memref<1x4x2x256xf32, #tpu.memory_space<vmem>>, vector<1x4x1x16xf32>
    %3 = vector.shape_cast %2 : vector<1x4x1x16xf32> to vector<4x16xf32>
    %c0_6 = arith.constant 0 : index
    %c0_7 = arith.constant 0 : index
    %c0_8 = arith.constant 0 : index
    %c64 = arith.constant 64 : index
    %4 = vector.load %arg2[%c0_6, %c0_7, %c0_8, %c64] : memref<1x4x2x256xf32, #tpu.memory_space<vmem>>, vector<1x4x1x16xf32>
    %5 = vector.shape_cast %4 : vector<1x4x1x16xf32> to vector<4x16xf32>
    %c0_9 = arith.constant 0 : index
    %c0_10 = arith.constant 0 : index
    %c0_11 = arith.constant 0 : index
    %c96 = arith.constant 96 : index
    %6 = vector.load %arg2[%c0_9, %c0_10, %c0_11, %c96] : memref<1x4x2x256xf32, #tpu.memory_space<vmem>>, vector<1x4x1x16xf32>
    %7 = vector.shape_cast %6 : vector<1x4x1x16xf32> to vector<4x16xf32>
    %c0_12 = arith.constant 0 : index
    %c0_13 = arith.constant 0 : index
    %c0_14 = arith.constant 0 : index
    %c128 = arith.constant 128 : index
    %8 = vector.load %arg2[%c0_12, %c0_13, %c0_14, %c128] : memref<1x4x2x256xf32, #tpu.memory_space<vmem>>, vector<1x4x1x16xf32>
    %9 = vector.shape_cast %8 : vector<1x4x1x16xf32> to vector<4x16xf32>
    %c0_15 = arith.constant 0 : index
    %c0_16 = arith.constant 0 : index
    %c0_17 = arith.constant 0 : index
    %c160 = arith.constant 160 : index
    %10 = vector.load %arg2[%c0_15, %c0_16, %c0_17, %c160] : memref<1x4x2x256xf32, #tpu.memory_space<vmem>>, vector<1x4x1x16xf32>
    %11 = vector.shape_cast %10 : vector<1x4x1x16xf32> to vector<4x16xf32>
    %c0_18 = arith.constant 0 : index
    %c0_19 = arith.constant 0 : index
    %c0_20 = arith.constant 0 : index
    %c192 = arith.constant 192 : index
    %12 = vector.load %arg2[%c0_18, %c0_19, %c0_20, %c192] : memref<1x4x2x256xf32, #tpu.memory_space<vmem>>, vector<1x4x1x16xf32>
    %13 = vector.shape_cast %12 : vector<1x4x1x16xf32> to vector<4x16xf32>
    %c0_21 = arith.constant 0 : index
    %c0_22 = arith.constant 0 : index
    %c0_23 = arith.constant 0 : index
    %c224 = arith.constant 224 : index
    %14 = vector.load %arg2[%c0_21, %c0_22, %c0_23, %c224] : memref<1x4x2x256xf32, #tpu.memory_space<vmem>>, vector<1x4x1x16xf32>
    %15 = vector.shape_cast %14 : vector<1x4x1x16xf32> to vector<4x16xf32>
    %16 = tpu.concatenate %1, %3, %5, %7, %9, %11, %13, %15 in 1 : vector<4x16xf32>, vector<4x16xf32>, vector<4x16xf32>, vector<4x16xf32>, vector<4x16xf32>, vector<4x16xf32>, vector<4x16xf32>, vector<4x16xf32> -> vector<4x128xf32>
    %c0_24 = arith.constant 0 : index
    %c0_25 = arith.constant 0 : index
    %c0_26 = arith.constant 0 : index
    %c0_27 = arith.constant 0 : index
    %17 = vector.load %arg3[%c0_24, %c0_25, %c0_26, %c0_27] : memref<1x2x8x128xf32, #tpu.memory_space<vmem>>, vector<1x1x4x128xf32>
    %18 = vector.shape_cast %17 : vector<1x1x4x128xf32> to vector<4x128xf32>
    %19 = vector.shape_cast %16 : vector<4x128xf32> to vector<1x1x4x128xf32>
    tpu.vector_store %arg3[%c0_24, %c0_25, %c0_26, %c0_27], %19 {strides = array<i32>} : memref<1x2x8x128xf32, #tpu.memory_space<vmem>>, vector<1x1x4x128xf32>,
    %c0_28 = arith.constant 0 : index
    %c0_29 = arith.constant 0 : index
    %c0_30 = arith.constant 0 : index
    %c16 = arith.constant 16 : index
    %20 = vector.load %arg2[%c0_28, %c0_29, %c0_30, %c16] : memref<1x4x2x256xf32, #tpu.memory_space<vmem>>, vector<1x4x1x16xf32>
    %21 = vector.shape_cast %20 : vector<1x4x1x16xf32> to vector<4x16xf32>
    %c0_31 = arith.constant 0 : index
    %c0_32 = arith.constant 0 : index
    %c0_33 = arith.constant 0 : index
    %c48 = arith.constant 48 : index
    %22 = vector.load %arg2[%c0_31, %c0_32, %c0_33, %c48] : memref<1x4x2x256xf32, #tpu.memory_space<vmem>>, vector<1x4x1x16xf32>
    %23 = vector.shape_cast %22 : vector<1x4x1x16xf32> to vector<4x16xf32>
    %c0_34 = arith.constant 0 : index
    %c0_35 = arith.constant 0 : index
    %c0_36 = arith.constant 0 : index
    %c80 = arith.constant 80 : index
    %24 = vector.load %arg2[%c0_34, %c0_35, %c0_36, %c80] : memref<1x4x2x256xf32, #tpu.memory_space<vmem>>, vector<1x4x1x16xf32>
    %25 = vector.shape_cast %24 : vector<1x4x1x16xf32> to vector<4x16xf32>
    %c0_37 = arith.constant 0 : index
    %c0_38 = arith.constant 0 : index
    %c0_39 = arith.constant 0 : index
    %c112 = arith.constant 112 : index
    %26 = vector.load %arg2[%c0_37, %c0_38, %c0_39, %c112] : memref<1x4x2x256xf32, #tpu.memory_space<vmem>>, vector<1x4x1x16xf32>
    %27 = vector.shape_cast %26 : vector<1x4x1x16xf32> to vector<4x16xf32>
    %c0_40 = arith.constant 0 : index
    %c0_41 = arith.constant 0 : index
    %c0_42 = arith.constant 0 : index
    %c144 = arith.constant 144 : index
    %28 = vector.load %arg2[%c0_40, %c0_41, %c0_42, %c144] : memref<1x4x2x256xf32, #tpu.memory_space<vmem>>, vector<1x4x1x16xf32>
    %29 = vector.shape_cast %28 : vector<1x4x1x16xf32> to vector<4x16xf32>
    %c0_43 = arith.constant 0 : index
    %c0_44 = arith.constant 0 : index
    %c0_45 = arith.constant 0 : index
    %c176 = arith.constant 176 : index
    %30 = vector.load %arg2[%c0_43, %c0_44, %c0_45, %c176] : memref<1x4x2x256xf32, #tpu.memory_space<vmem>>, vector<1x4x1x16xf32>
    %31 = vector.shape_cast %30 : vector<1x4x1x16xf32> to vector<4x16xf32>
    %c0_46 = arith.constant 0 : index
    %c0_47 = arith.constant 0 : index
    %c0_48 = arith.constant 0 : index
    %c208 = arith.constant 208 : index
    %32 = vector.load %arg2[%c0_46, %c0_47, %c0_48, %c208] : memref<1x4x2x256xf32, #tpu.memory_space<vmem>>, vector<1x4x1x16xf32>
    %33 = vector.shape_cast %32 : vector<1x4x1x16xf32> to vector<4x16xf32>
    %c0_49 = arith.constant 0 : index
    %c0_50 = arith.constant 0 : index
    %c0_51 = arith.constant 0 : index
    %c240 = arith.constant 240 : index
    %34 = vector.load %arg2[%c0_49, %c0_50, %c0_51, %c240] : memref<1x4x2x256xf32, #tpu.memory_space<vmem>>, vector<1x4x1x16xf32>
    %35 = vector.shape_cast %34 : vector<1x4x1x16xf32> to vector<4x16xf32>
    %36 = tpu.concatenate %21, %23, %25, %27, %29, %31, %33, %35 in 1 : vector<4x16xf32>, vector<4x16xf32>, vector<4x16xf32>, vector<4x16xf32>, vector<4x16xf32>, vector<4x16xf32>, vector<4x16xf32>, vector<4x16xf32> -> vector<4x128xf32>
    %c0_52 = arith.constant 0 : index
    %c0_53 = arith.constant 0 : index
    %c4 = arith.constant 4 : index
    %c0_54 = arith.constant 0 : index
    %37 = vector.load %arg3[%c0_52, %c0_53, %c4, %c0_54] : memref<1x2x8x128xf32, #tpu.memory_space<vmem>>, vector<1x1x4x128xf32>
    %38 = vector.shape_cast %37 : vector<1x1x4x128xf32> to vector<4x128xf32>
    %39 = vector.shape_cast %36 : vector<4x128xf32> to vector<1x1x4x128xf32>
    tpu.vector_store %arg3[%c0_52, %c0_53, %c4, %c0_54], %39 {strides = array<i32>} : memref<1x2x8x128xf32, #tpu.memory_space<vmem>>, vector<1x1x4x128xf32>,
    %c0_55 = arith.constant 0 : index
    %c0_56 = arith.constant 0 : index
    %c1 = arith.constant 1 : index
    %c0_57 = arith.constant 0 : index
    %40 = vector.load %arg2[%c0_55, %c0_56, %c1, %c0_57] : memref<1x4x2x256xf32, #tpu.memory_space<vmem>>, vector<1x4x1x16xf32>
    %41 = vector.shape_cast %40 : vector<1x4x1x16xf32> to vector<4x16xf32>
    %c0_58 = arith.constant 0 : index
    %c0_59 = arith.constant 0 : index
    %c1_60 = arith.constant 1 : index
    %c32_61 = arith.constant 32 : index
    %42 = vector.load %arg2[%c0_58, %c0_59, %c1_60, %c32_61] : memref<1x4x2x256xf32, #tpu.memory_space<vmem>>, vector<1x4x1x16xf32>
    %43 = vector.shape_cast %42 : vector<1x4x1x16xf32> to vector<4x16xf32>
    %c0_62 = arith.constant 0 : index
    %c0_63 = arith.constant 0 : index
    %c1_64 = arith.constant 1 : index
    %c64_65 = arith.constant 64 : index
    %44 = vector.load %arg2[%c0_62, %c0_63, %c1_64, %c64_65] : memref<1x4x2x256xf32, #tpu.memory_space<vmem>>, vector<1x4x1x16xf32>
    %45 = vector.shape_cast %44 : vector<1x4x1x16xf32> to vector<4x16xf32>
    %c0_66 = arith.constant 0 : index
    %c0_67 = arith.constant 0 : index
    %c1_68 = arith.constant 1 : index
    %c96_69 = arith.constant 96 : index
    %46 = vector.load %arg2[%c0_66, %c0_67, %c1_68, %c96_69] : memref<1x4x2x256xf32, #tpu.memory_space<vmem>>, vector<1x4x1x16xf32>
    %47 = vector.shape_cast %46 : vector<1x4x1x16xf32> to vector<4x16xf32>
    %c0_70 = arith.constant 0 : index
    %c0_71 = arith.constant 0 : index
    %c1_72 = arith.constant 1 : index
    %c128_73 = arith.constant 128 : index
    %48 = vector.load %arg2[%c0_70, %c0_71, %c1_72, %c128_73] : memref<1x4x2x256xf32, #tpu.memory_space<vmem>>, vector<1x4x1x16xf32>
    %49 = vector.shape_cast %48 : vector<1x4x1x16xf32> to vector<4x16xf32>
    %c0_74 = arith.constant 0 : index
    %c0_75 = arith.constant 0 : index
    %c1_76 = arith.constant 1 : index
    %c160_77 = arith.constant 160 : index
    %50 = vector.load %arg2[%c0_74, %c0_75, %c1_76, %c160_77] : memref<1x4x2x256xf32, #tpu.memory_space<vmem>>, vector<1x4x1x16xf32>
    %51 = vector.shape_cast %50 : vector<1x4x1x16xf32> to vector<4x16xf32>
    %c0_78 = arith.constant 0 : index
    %c0_79 = arith.constant 0 : index
    %c1_80 = arith.constant 1 : index
    %c192_81 = arith.constant 192 : index
    %52 = vector.load %arg2[%c0_78, %c0_79, %c1_80, %c192_81] : memref<1x4x2x256xf32, #tpu.memory_space<vmem>>, vector<1x4x1x16xf32>
    %53 = vector.shape_cast %52 : vector<1x4x1x16xf32> to vector<4x16xf32>
    %c0_82 = arith.constant 0 : index
    %c0_83 = arith.constant 0 : index
    %c1_84 = arith.constant 1 : index
    %c224_85 = arith.constant 224 : index
    %54 = vector.load %arg2[%c0_82, %c0_83, %c1_84, %c224_85] : memref<1x4x2x256xf32, #tpu.memory_space<vmem>>, vector<1x4x1x16xf32>
    %55 = vector.shape_cast %54 : vector<1x4x1x16xf32> to vector<4x16xf32>
    %56 = tpu.concatenate %41, %43, %45, %47, %49, %51, %53, %55 in 1 : vector<4x16xf32>, vector<4x16xf32>, vector<4x16xf32>, vector<4x16xf32>, vector<4x16xf32>, vector<4x16xf32>, vector<4x16xf32>, vector<4x16xf32> -> vector<4x128xf32>
    %c0_86 = arith.constant 0 : index
    %c1_87 = arith.constant 1 : index
    %c0_88 = arith.constant 0 : index
    %c0_89 = arith.constant 0 : index
    %57 = vector.load %arg3[%c0_86, %c1_87, %c0_88, %c0_89] : memref<1x2x8x128xf32, #tpu.memory_space<vmem>>, vector<1x1x4x128xf32>
    %58 = vector.shape_cast %57 : vector<1x1x4x128xf32> to vector<4x128xf32>
    %59 = vector.shape_cast %56 : vector<4x128xf32> to vector<1x1x4x128xf32>
    tpu.vector_store %arg3[%c0_86, %c1_87, %c0_88, %c0_89], %59 {strides = array<i32>} : memref<1x2x8x128xf32, #tpu.memory_space<vmem>>, vector<1x1x4x128xf32>,
    %c0_90 = arith.constant 0 : index
    %c0_91 = arith.constant 0 : index
    %c1_92 = arith.constant 1 : index
    %c16_93 = arith.constant 16 : index
    %60 = vector.load %arg2[%c0_90, %c0_91, %c1_92, %c16_93] : memref<1x4x2x256xf32, #tpu.memory_space<vmem>>, vector<1x4x1x16xf32>
    %61 = vector.shape_cast %60 : vector<1x4x1x16xf32> to vector<4x16xf32>
    %c0_94 = arith.constant 0 : index
    %c0_95 = arith.constant 0 : index
    %c1_96 = arith.constant 1 : index
    %c48_97 = arith.constant 48 : index
    %62 = vector.load %arg2[%c0_94, %c0_95, %c1_96, %c48_97] : memref<1x4x2x256xf32, #tpu.memory_space<vmem>>, vector<1x4x1x16xf32>
    %63 = vector.shape_cast %62 : vector<1x4x1x16xf32> to vector<4x16xf32>
    %c0_98 = arith.constant 0 : index
    %c0_99 = arith.constant 0 : index
    %c1_100 = arith.constant 1 : index
    %c80_101 = arith.constant 80 : index
    %64 = vector.load %arg2[%c0_98, %c0_99, %c1_100, %c80_101] : memref<1x4x2x256xf32, #tpu.memory_space<vmem>>, vector<1x4x1x16xf32>
    %65 = vector.shape_cast %64 : vector<1x4x1x16xf32> to vector<4x16xf32>
    %c0_102 = arith.constant 0 : index
    %c0_103 = arith.constant 0 : index
    %c1_104 = arith.constant 1 : index
    %c112_105 = arith.constant 112 : index
    %66 = vector.load %arg2[%c0_102, %c0_103, %c1_104, %c112_105] : memref<1x4x2x256xf32, #tpu.memory_space<vmem>>, vector<1x4x1x16xf32>
    %67 = vector.shape_cast %66 : vector<1x4x1x16xf32> to vector<4x16xf32>
    %c0_106 = arith.constant 0 : index
    %c0_107 = arith.constant 0 : index
    %c1_108 = arith.constant 1 : index
    %c144_109 = arith.constant 144 : index
    %68 = vector.load %arg2[%c0_106, %c0_107, %c1_108, %c144_109] : memref<1x4x2x256xf32, #tpu.memory_space<vmem>>, vector<1x4x1x16xf32>
    %69 = vector.shape_cast %68 : vector<1x4x1x16xf32> to vector<4x16xf32>
    %c0_110 = arith.constant 0 : index
    %c0_111 = arith.constant 0 : index
    %c1_112 = arith.constant 1 : index
    %c176_113 = arith.constant 176 : index
    %70 = vector.load %arg2[%c0_110, %c0_111, %c1_112, %c176_113] : memref<1x4x2x256xf32, #tpu.memory_space<vmem>>, vector<1x4x1x16xf32>
    %71 = vector.shape_cast %70 : vector<1x4x1x16xf32> to vector<4x16xf32>
    %c0_114 = arith.constant 0 : index
    %c0_115 = arith.constant 0 : index
    %c1_116 = arith.constant 1 : index
    %c208_117 = arith.constant 208 : index
    %72 = vector.load %arg2[%c0_114, %c0_115, %c1_116, %c208_117] : memref<1x4x2x256xf32, #tpu.memory_space<vmem>>, vector<1x4x1x16xf32>
    %73 = vector.shape_cast %72 : vector<1x4x1x16xf32> to vector<4x16xf32>
    %c0_118 = arith.constant 0 : index
    %c0_119 = arith.constant 0 : index
    %c1_120 = arith.constant 1 : index
    %c240_121 = arith.constant 240 : index
    %74 = vector.load %arg2[%c0_118, %c0_119, %c1_120, %c240_121] : memref<1x4x2x256xf32, #tpu.memory_space<vmem>>, vector<1x4x1x16xf32>
    %75 = vector.shape_cast %74 : vector<1x4x1x16xf32> to vector<4x16xf32>
    %76 = tpu.concatenate %61, %63, %65, %67, %69, %71, %73, %75 in 1 : vector<4x16xf32>, vector<4x16xf32>, vector<4x16xf32>, vector<4x16xf32>, vector<4x16xf32>, vector<4x16xf32>, vector<4x16xf32>, vector<4x16xf32> -> vector<4x128xf32>
    %c0_122 = arith.constant 0 : index
    %c1_123 = arith.constant 1 : index
    %c4_124 = arith.constant 4 : index
    %c0_125 = arith.constant 0 : index
    %77 = vector.load %arg3[%c0_122, %c1_123, %c4_124, %c0_125] : memref<1x2x8x128xf32, #tpu.memory_space<vmem>>, vector<1x1x4x128xf32>
    %78 = vector.shape_cast %77 : vector<1x1x4x128xf32> to vector<4x128xf32>
    %79 = vector.shape_cast %76 : vector<4x128xf32> to vector<1x1x4x128xf32>
    tpu.vector_store %arg3[%c0_122, %c1_123, %c4_124, %c0_125], %79 {strides = array<i32>} : memref<1x2x8x128xf32, #tpu.memory_space<vmem>>, vector<1x1x4x128xf32>,
    return
  }
  func.func @transform_0(%arg0: i32, %arg1: i32) -> (i32, i32, i32, i32) {
    %c0_i32 = arith.constant 0 : i32
    %c0_i32_0 = arith.constant 0 : i32
    %c0_i32_1 = arith.constant 0 : i32
    return %arg0, %c0_i32, %arg1, %c0_i32_0 : i32, i32, i32, i32
  }
  func.func @transform_1(%arg0: i32, %arg1: i32) -> (i32, i32, i32, i32) {
    %c0_i32 = arith.constant 0 : i32
    %c0_i32_0 = arith.constant 0 : i32
    %c0_i32_1 = arith.constant 0 : i32
    return %arg0, %arg1, %c0_i32, %c0_i32_0 : i32, i32, i32, i32
  }
}

</mosaic_0001>

<llo_original>
// kernel: tpu_custom_call.1
$region0: #{tpu_custom_call.1}
  #allocation0 [shape = 'u32[]', space=smem, size = 0x4, offset = 0x4, fixed_abs, tag = 'smem constant byte address 0x4 - core index']
  #allocation1 [shape = 'u32[144,128]{1,0:T(1,128)}', space=vmem, size = 0x12000, scoped, tag = 'internal scratch']
  %s0 = inlined_call_operand.hbm [shape: f32[2,4,2,256], index: 0, kind: input, shape index: {}]
  %s1 = inlined_call_operand.hbm [shape: f32[2,2,8,128], index: 1, kind: output, shape index: {}]
  %s2 = sld [smem:[#allocation0]]
  $region41: #{tpu_custom_call.1} parent=0
    _
  %s4 = ssub.s32 1, %s2
  %s5 = scalar_select 0, %s4, %s2
  $region1: #{tpu_custom_call.1} parent=0
    #allocation2 [shape = 'u8[16384]{0}', space=vmem, size = 0x4000, scoped, tag = 'input window, operand 0']
    #allocation3 [shape = 's32[2]{0}', space=sflag, size = 0x8, scoped, tag = 'scoped memory for tpu_custom_call.1']
    #allocation4 [shape = 's32[2]{0}', space=sflag, size = 0x8, scoped, tag = 'scoped memory for tpu_custom_call.1']
    #allocation5 [shape = 'u8[16384]{0}', space=vmem, size = 0x4000, scoped, tag = 'output window, operand 0']
    %6 = vsyncpa [#allocation3], 0
    %s7 = scalar_lea.sflag [#allocation3], 1
    %8 = vsyncpa %s7, 0
    %9 = vsyncpa [#allocation4], 0
    %s10 = scalar_lea.sflag [#allocation4], 1
    %11 = vsyncpa %s10, 0
    loop: start=0, step=1, limit=4
    $region2: #{tpu_custom_call.1} parent=1 // loop_pre_header
      _
    $region3: #{tpu_custom_call.1} parent=1 // loop_header
      %s13 = sphi 0, %s17
      %p14 = scmp.ge.s32.totalorder %s13, 4
      %s20 = sphi 0, %s32
      %s21 = sphi 0, %s28
      %s22 = sphi 0, %s20
      %s23 = sphi 0, %s21
      %s24 = sphi 0, %s22
      %s25 = sphi 0, %s23
      %s37 = sphi 0, %s39
      %s40 = sphi 0, %s37
      %s41 = sphi 0, %s40
      %s57 = sphi 0, %s41
      %s65 = sphi 0, %s67
      %s68 = sphi 0, %s65
      %s69 = sphi 0, %s68
      %s85 = sphi 0, %s69
    $region4: #{tpu_custom_call.1} parent=1 // loop_header_branch
      %16 = sbr.rel (%p14) target = $region8
    $region5: #{tpu_custom_call.1} parent=1 // loop_body
      %s18 = ssub.s32 %s13, 1
      %s19 = ssub.s32 %s13, 2
      %s26 = sadd.s32 1, %s21
      %p27 = scmp.ge.s32.totalorder %s26, 1
      %s28 = scalar_select %p27, 0, %s26
      %s29 = sadd.s32 1, %s20
      %s30 = scalar_select %p27, %s29, %s20
      %p31 = scmp.ge.s32.totalorder %s30, 2
      %s32 = scalar_select %p31, 0, %s30
      %s33 = ssub.s32 %s20, %s32
      %s34 = ssub.s32 %s21, %s28
      %s35 = sor.u32 %s33, %s34
      %p36 = scmp.eq.s32.totalorder %s35, 0
      %s38 = sadd.s32 %s37, 1
      %s39 = scalar_select %p36, %s37, %s38
      %p42 = pneg %p36
      %p43 = scmp.eq.s32.totalorder %s13, 1
      %p44 = por %p42, %p43
      %p45 = scmp.ne.s32.totalorder %s37, %s40
      %p46 = scmp.eq.s32.totalorder %s13, 0
      %p47 = por %p45, %p46
      %p48 = scmp.ne.s32.totalorder %s37, %s40
      %p49 = scmp.eq.s32.totalorder %s18, 1
      %p50 = por %p48, %p49
      %p51 = scmp.ne.s32.totalorder %s40, %s41
      %p52 = scmp.eq.s32.totalorder %s18, 0
      %p53 = por %p51, %p52
      %p54 = scmp.ne.s32.totalorder %s40, %s41
      %p55 = scmp.eq.s32.totalorder %s19, 1
      %p56 = por %p54, %p55
      %p58 = scmp.ne.s32.totalorder %s41, %s57
      %p59 = scmp.eq.s32.totalorder %s19, 0
      %p60 = por %p58, %p59
      %s61 = ssub.s32 %s20, %s32
      %s62 = ssub.s32 %s21, %s28
      %s63 = sor.u32 %s61, %s62
      %p64 = scmp.eq.s32.totalorder %s63, 0
      %s66 = sadd.s32 %s65, 1
      %s67 = scalar_select %p64, %s65, %s66
      %p70 = pneg %p64
      %p71 = scmp.eq.s32.totalorder %s13, 1
      %p72 = por %p70, %p71
      %p73 = scmp.ne.s32.totalorder %s65, %s68
      %p74 = scmp.eq.s32.totalorder %s13, 0
      %p75 = por %p73, %p74
      %p76 = scmp.ne.s32.totalorder %s65, %s68
      %p77 = scmp.eq.s32.totalorder %s18, 1
      %p78 = por %p76, %p77
      %p79 = scmp.ne.s32.totalorder %s68, %s69
      %p80 = scmp.eq.s32.totalorder %s18, 0
      %p81 = por %p79, %p80
      %p82 = scmp.ne.s32.totalorder %s68, %s69
      %p83 = scmp.eq.s32.totalorder %s19, 1
      %p84 = por %p82, %p83
      %p86 = scmp.ne.s32.totalorder %s69, %s85
      %p87 = scmp.eq.s32.totalorder %s19, 0
      %p88 = por %p86, %p87
      %p89 = scmp.le.s32.totalorder 1, %s13
      %p90 = scmp.lt.s32.totalorder %s13, 3
      %p91 = pnand %p89, %p90
      %p92 = pneg %p91
      // Predicated region
      $region9: #{tpu_custom_call.1} parent=5 // pred_check
        _
      $region10: #{tpu_custom_call.1} parent=5 // pred_check_branch
        %94 = sbr.rel (%p91) target = $region12
      $region11: #{tpu_custom_call.1} parent=5 // pred_region
        %s95 = ssub.s32 %s13, 1
      $region12: #{tpu_custom_call.1} parent=5 // pred_fallthru
        _
      %p96 = scmp.lt.s32.totalorder %s13, 2
      // Predicated region
      $region13: #{tpu_custom_call.1} parent=5 // pred_check
        %p97 = pneg %p96
      $region14: #{tpu_custom_call.1} parent=5 // pred_check_branch
        %99 = sbr.rel (%p97) target = $region16
      $region15: #{tpu_custom_call.1} parent=5 // pred_region
        // Predicated region
        $region17: #{tpu_custom_call.1} parent=15 // pred_check
          %p100 = pneg %p47
        $region18: #{tpu_custom_call.1} parent=15 // pred_check_branch
          %102 = sbr.rel (%p100) target = $region20
        $region19: #{tpu_custom_call.1} parent=15 // pred_region
          %s103 = sand.u32 %s37, 1
          %s104 = scalar_lea.sflag [#allocation3], %s103
          %s105 = sand.u32 %s37, 1
          %s106 = smul.addr %s105, 16
          %s107 = scalar_lea.vmem [#allocation2], %s106
          %s109 = ssub.s32 256, 256
          %110 = vsyncadd %s104, %s109
          %s111 = smul.addr %s21, 2
          %s112 = smul.addr %s20, 8
          %s113 = sadd.s32 %s111, %s112
          %s114 = smul.addr %s113, 32
          %s115 = scalar_lea.hbm %s0, %s114
          %s116 = sshll.u32 %s107, 4
          %s117 = int_to_ptr.vmem [resolvable:$true] %s116
          %122 = dma.hbm_to_vmem [thread:$0]  %s115, 256, %s117, %s104, 64, 64, 4
        $region20: #{tpu_custom_call.1} parent=15 // pred_fallthru
          _
      $region16: #{tpu_custom_call.1} parent=5 // pred_fallthru
        _
      %p123 = scmp.le.s32.totalorder 1, %s13
      %p124 = scmp.lt.s32.totalorder %s13, 3
      %p125 = pnand %p123, %p124
      %p126 = pneg %p125
      // Predicated region
      $region21: #{tpu_custom_call.1} parent=5 // pred_check
        _
      $region22: #{tpu_custom_call.1} parent=5 // pred_check_branch
        %128 = sbr.rel (%p125) target = $region24
      $region23: #{tpu_custom_call.1} parent=5 // pred_region
        %s129 = ssub.s32 %s13, 1
        %s130 = sand.u32 %s40, 1
        %s131 = scalar_lea.sflag [#allocation3], %s130
        %s132 = sand.u32 %s40, 1
        %s133 = smul.addr %s132, 16
        %s134 = scalar_lea.vmem [#allocation2], %s133
        // Predicated region
        $region25: #{tpu_custom_call.1} parent=23 // pred_check
          %p135 = pneg %p53
        $region26: #{tpu_custom_call.1} parent=23 // pred_check_branch
          %137 = sbr.rel (%p135) target = $region28
        $region27: #{tpu_custom_call.1} parent=23 // pred_region
          %138 = dma.done %s131, 256
        $region28: #{tpu_custom_call.1} parent=23 // pred_fallthru
          _
        %s139 = sand.u32 %s40, 1
        %s140 = scalar_lea.sflag [#allocation3], %s139
        %s141 = sand.u32 %s40, 1
        %s142 = smul.addr %s141, 16
        %s143 = scalar_lea.vmem [#allocation2], %s142
        %p144 = pneg %p53
        %p145 = pneg %p50
        %p146 = pneg %p81
        %p147 = pneg %p78
        %s148 = sand.u32 %s68, 1
        %s149 = scalar_lea.sflag [#allocation4], %s148
        %s150 = sand.u32 %s68, 1
        %s151 = smul.addr %s150, 16
        %s152 = scalar_lea.vmem [#allocation5], %s151
        %s153 = smul.u32 2, %s23
        %v154 = vld [vmem:[%s134] sm:$0x1]
        %v155 = vld [vmem:[%s134 + $0x4] sm:$0x1]
        %v156 = vld [vmem:[%s134 + $0x8] sm:$0x1]
        %v157 = vld [vmem:[%s134 + $0xc] sm:$0x1]
        %v158 = vld [vmem:[%s134 + $0x2] sm:$0x1]
        %v159 = vld [vmem:[%s134 + $0x6] sm:$0x1]
        %v160 = vld [vmem:[%s134 + $0xa] sm:$0x1]
        %v161 = vld [vmem:[%s134 + $0xe] sm:$0x1]
        %v166 = vlaneseq
        %v167 = vshrl.u32 %v166, 7
        %v168 = vsub.s32 0, %v167
        %v169 = vrot.slane %v154, %v168
        %v170 = vlaneseq
        %v171 = vshrl.u32 %v170, 7
        %v172 = vsub.s32 0, %v171
        %v173 = vrot.slane %v155, %v172
        %v174 = vlaneseq
        %v175 = vshrl.u32 %v174, 7
        %v176 = vsub.s32 0, %v175
        %v177 = vrot.slane %v156, %v176
        %v178 = vlaneseq
        %v179 = vshrl.u32 %v178, 7
        %v180 = vsub.s32 0, %v179
        %v181 = vrot.slane %v157, %v180
        %vm182 = vcmask 1041409
        %v183 = vsel %vm182, %v173, %v169
        %vm184 = vcmask 1042434
        %v185 = vsel %vm184, %v177, %v183
        %vm186 = vcmask 1043459
        %v187 = vsel %vm186, %v181, %v185
        %189 = vrot.lane.b32.xlu0 %v187, 112
        %v190 = vpop.permute.xlu0 %189
        %192 = vrot.lane.b32.xlu0 %v187, 96
        %v193 = vpop.permute.xlu0 %192
        %195 = vrot.lane.b32.xlu0 %v187, 80
        %v196 = vpop.permute.xlu0 %195
        %v202 = vlaneseq
        %v203 = vshrl.u32 %v202, 7
        %v204 = vsub.s32 0, %v203
        %v205 = vrot.slane %v158, %v204
        %v206 = vlaneseq
        %v207 = vshrl.u32 %v206, 7
        %v208 = vsub.s32 0, %v207
        %v209 = vrot.slane %v159, %v208
        %v210 = vlaneseq
        %v211 = vshrl.u32 %v210, 7
        %v212 = vsub.s32 0, %v211
        %v213 = vrot.slane %v160, %v212
        %v214 = vlaneseq
        %v215 = vshrl.u32 %v214, 7
        %v216 = vsub.s32 0, %v215
        %v217 = vrot.slane %v161, %v216
        %v218 = vsel %vm182, %v209, %v205
        %v219 = vsel %vm184, %v213, %v218
        %v220 = vsel %vm186, %v217, %v219
        %221 = vrot.lane.b32.xlu0 %v220, 64
        %v222 = vpop.permute.xlu0 %221
        %224 = vrot.lane.b32.xlu0 %v220, 48
        %v225 = vpop.permute.xlu0 %224
        %227 = vrot.lane.b32.xlu0 %v220, 32
        %v228 = vpop.permute.xlu0 %227
        %230 = vrot.lane.b32.xlu0 %v220, 16
        %v231 = vpop.permute.xlu0 %230
        %vm233 = vcmask 130048
        %v234 = vsel %vm233, %v187, %v190
        %vm235 = vcmask 261120
        %v236 = vsel %vm235, %v234, %v193
        %vm237 = vcmask 392192
        %v238 = vsel %vm237, %v236, %v196
        %vm239 = vcmask 523264
        %v240 = vsel %vm239, %v238, %v222
        %vm241 = vcmask 654336
        %v242 = vsel %vm241, %v240, %v225
        %vm243 = vcmask 785408
        %v244 = vsel %vm243, %v242, %v228
        %vm245 = vcmask 916480
        %v246 = vsel %vm245, %v244, %v231
        %247 = vst [vmem:[%s152] sm:$0xf] %v246
        %v248 = vld [vmem:[%s134] sm:$0x1]
        %v249 = vld [vmem:[%s134 + $0x4] sm:$0x1]
        %v250 = vld [vmem:[%s134 + $0x8] sm:$0x1]
        %v251 = vld [vmem:[%s134 + $0xc] sm:$0x1]
        %v252 = vld [vmem:[%s134 + $0x2] sm:$0x1]
        %v253 = vld [vmem:[%s134 + $0x6] sm:$0x1]
        %v254 = vld [vmem:[%s134 + $0xa] sm:$0x1]
        %v255 = vld [vmem:[%s134 + $0xe] sm:$0x1]
        %v260 = vlaneseq
        %v261 = vshrl.u32 %v260, 7
        %v262 = vsub.s32 0, %v261
        %v263 = vrot.slane %v248, %v262
        %v264 = vlaneseq
        %v265 = vshrl.u32 %v264, 7
        %v266 = vsub.s32 0, %v265
        %v267 = vrot.slane %v249, %v266
        %v268 = vlaneseq
        %v269 = vshrl.u32 %v268, 7
        %v270 = vsub.s32 0, %v269
        %v271 = vrot.slane %v250, %v270
        %v272 = vlaneseq
        %v273 = vshrl.u32 %v272, 7
        %v274 = vsub.s32 0, %v273
        %v275 = vrot.slane %v251, %v274
        %v276 = vsel %vm182, %v267, %v263
        %v277 = vsel %vm184, %v271, %v276
        %v278 = vsel %vm186, %v275, %v277
        %279 = vrot.lane.b32.xlu0 %v278, 112
        %v280 = vpop.permute.xlu0 %279
        %282 = vrot.lane.b32.xlu0 %v278, 96
        %v283 = vpop.permute.xlu0 %282
        %285 = vrot.lane.b32.xlu0 %v278, 80
        %v286 = vpop.permute.xlu0 %285
        %288 = vrot.lane.b32.xlu0 %v278, 64
        %v289 = vpop.permute.xlu0 %288
        %v295 = vlaneseq
        %v296 = vshrl.u32 %v295, 7
        %v297 = vsub.s32 0, %v296
        %v298 = vrot.slane %v252, %v297
        %v299 = vlaneseq
        %v300 = vshrl.u32 %v299, 7
        %v301 = vsub.s32 0, %v300
        %v302 = vrot.slane %v253, %v301
        %v303 = vlaneseq
        %v304 = vshrl.u32 %v303, 7
        %v305 = vsub.s32 0, %v304
        %v306 = vrot.slane %v254, %v305
        %v307 = vlaneseq
        %v308 = vshrl.u32 %v307, 7
        %v309 = vsub.s32 0, %v308
        %v310 = vrot.slane %v255, %v309
        %v311 = vsel %vm182, %v302, %v298
        %v312 = vsel %vm184, %v306, %v311
        %v313 = vsel %vm186, %v310, %v312
        %314 = vrot.lane.b32.xlu0 %v313, 48
        %v315 = vpop.permute.xlu0 %314
        %317 = vrot.lane.b32.xlu0 %v313, 32
        %v318 = vpop.permute.xlu0 %317
        %320 = vrot.lane.b32.xlu0 %v313, 16
        %v321 = vpop.permute.xlu0 %320
        %v324 = vsel %vm233, %v280, %v283
        %v325 = vsel %vm235, %v324, %v286
        %v326 = vsel %vm237, %v325, %v289
        %v327 = vsel %vm239, %v326, %v315
        %v328 = vsel %vm241, %v327, %v318
        %v329 = vsel %vm243, %v328, %v321
        %v330 = vsel %vm245, %v329, %v313
        %331 = vst [vmem:[%s152 + $0x4] sm:$0xf] %v330
        %v332 = vld [vmem:[%s134 + $0x1] sm:$0x1]
        %v333 = vld [vmem:[%s134 + $0x5] sm:$0x1]
        %v334 = vld [vmem:[%s134 + $0x9] sm:$0x1]
        %v335 = vld [vmem:[%s134 + $0xd] sm:$0x1]
        %v336 = vld [vmem:[%s134 + $0x3] sm:$0x1]
        %v337 = vld [vmem:[%s134 + $0x7] sm:$0x1]
        %v338 = vld [vmem:[%s134 + $0xb] sm:$0x1]
        %v339 = vld [vmem:[%s134 + $0xf] sm:$0x1]
        %v344 = vlaneseq
        %v345 = vshrl.u32 %v344, 7
        %v346 = vsub.s32 0, %v345
        %v347 = vrot.slane %v332, %v346
        %v348 = vlaneseq
        %v349 = vshrl.u32 %v348, 7
        %v350 = vsub.s32 0, %v349
        %v351 = vrot.slane %v333, %v350
        %v352 = vlaneseq
        %v353 = vshrl.u32 %v352, 7
        %v354 = vsub.s32 0, %v353
        %v355 = vrot.slane %v334, %v354
        %v356 = vlaneseq
        %v357 = vshrl.u32 %v356, 7
        %v358 = vsub.s32 0, %v357
        %v359 = vrot.slane %v335, %v358
        %v360 = vsel %vm182, %v351, %v347
        %v361 = vsel %vm184, %v355, %v360
        %v362 = vsel %vm186, %v359, %v361
        %364 = vrot.lane.b32.xlu0 %v362, 112
        %v365 = vpop.permute.xlu0 %364
        %367 = vrot.lane.b32.xlu0 %v362, 96
        %v368 = vpop.permute.xlu0 %367
        %370 = vrot.lane.b32.xlu0 %v362, 80
        %v371 = vpop.permute.xlu0 %370
        %v377 = vlaneseq
        %v378 = vshrl.u32 %v377, 7
        %v379 = vsub.s32 0, %v378
        %v380 = vrot.slane %v336, %v379
        %v381 = vlaneseq
        %v382 = vshrl.u32 %v381, 7
        %v383 = vsub.s32 0, %v382
        %v384 = vrot.slane %v337, %v383
        %v385 = vlaneseq
        %v386 = vshrl.u32 %v385, 7
        %v387 = vsub.s32 0, %v386
        %v388 = vrot.slane %v338, %v387
        %v389 = vlaneseq
        %v390 = vshrl.u32 %v389, 7
        %v391 = vsub.s32 0, %v390
        %v392 = vrot.slane %v339, %v391
        %v393 = vsel %vm182, %v384, %v380
        %v394 = vsel %vm184, %v388, %v393
        %v395 = vsel %vm186, %v392, %v394
        %396 = vrot.lane.b32.xlu0 %v395, 64
        %v397 = vpop.permute.xlu0 %396
        %399 = vrot.lane.b32.xlu0 %v395, 48
        %v400 = vpop.permute.xlu0 %399
        %402 = vrot.lane.b32.xlu0 %v395, 32
        %v403 = vpop.permute.xlu0 %402
        %405 = vrot.lane.b32.xlu0 %v395, 16
        %v406 = vpop.permute.xlu0 %405
        %v408 = vsel %vm233, %v362, %v365
        %v409 = vsel %vm235, %v408, %v368
        %v410 = vsel %vm237, %v409, %v371
        %v411 = vsel %vm239, %v410, %v397
        %v412 = vsel %vm241, %v411, %v400
        %v413 = vsel %vm243, %v412, %v403
        %v414 = vsel %vm245, %v413, %v406
        %s415 = scalar_lea.vmem %s152, 8 [#allocation5]
        %416 = vst [vmem:[%s415] sm:$0xf] %v414
        %v417 = vld [vmem:[%s134 + $0x1] sm:$0x1]
        %v418 = vld [vmem:[%s134 + $0x5] sm:$0x1]
        %v419 = vld [vmem:[%s134 + $0x9] sm:$0x1]
        %v420 = vld [vmem:[%s134 + $0xd] sm:$0x1]
        %v421 = vld [vmem:[%s134 + $0x3] sm:$0x1]
        %v422 = vld [vmem:[%s134 + $0x7] sm:$0x1]
        %v423 = vld [vmem:[%s134 + $0xb] sm:$0x1]
        %v424 = vld [vmem:[%s134 + $0xf] sm:$0x1]
        %v429 = vlaneseq
        %v430 = vshrl.u32 %v429, 7
        %v431 = vsub.s32 0, %v430
        %v432 = vrot.slane %v417, %v431
        %v433 = vlaneseq
        %v434 = vshrl.u32 %v433, 7
        %v435 = vsub.s32 0, %v434
        %v436 = vrot.slane %v418, %v435
        %v437 = vlaneseq
        %v438 = vshrl.u32 %v437, 7
        %v439 = vsub.s32 0, %v438
        %v440 = vrot.slane %v419, %v439
        %v441 = vlaneseq
        %v442 = vshrl.u32 %v441, 7
        %v443 = vsub.s32 0, %v442
        %v444 = vrot.slane %v420, %v443
        %v445 = vsel %vm182, %v436, %v432
        %v446 = vsel %vm184, %v440, %v445
        %v447 = vsel %vm186, %v444, %v446
        %448 = vrot.lane.b32.xlu0 %v447, 112
        %v449 = vpop.permute.xlu0 %448
        %451 = vrot.lane.b32.xlu0 %v447, 96
        %v452 = vpop.permute.xlu0 %451
        %454 = vrot.lane.b32.xlu0 %v447, 80
        %v455 = vpop.permute.xlu0 %454
        %457 = vrot.lane.b32.xlu0 %v447, 64
        %v458 = vpop.permute.xlu0 %457
        %v464 = vlaneseq
        %v465 = vshrl.u32 %v464, 7
        %v466 = vsub.s32 0, %v465
        %v467 = vrot.slane %v421, %v466
        %v468 = vlaneseq
        %v469 = vshrl.u32 %v468, 7
        %v470 = vsub.s32 0, %v469
        %v471 = vrot.slane %v422, %v470
        %v472 = vlaneseq
        %v473 = vshrl.u32 %v472, 7
        %v474 = vsub.s32 0, %v473
        %v475 = vrot.slane %v423, %v474
        %v476 = vlaneseq
        %v477 = vshrl.u32 %v476, 7
        %v478 = vsub.s32 0, %v477
        %v479 = vrot.slane %v424, %v478
        %v480 = vsel %vm182, %v471, %v467
        %v481 = vsel %vm184, %v475, %v480
        %v482 = vsel %vm186, %v479, %v481
        %483 = vrot.lane.b32.xlu0 %v482, 48
        %v484 = vpop.permute.xlu0 %483
        %486 = vrot.lane.b32.xlu0 %v482, 32
        %v487 = vpop.permute.xlu0 %486
        %489 = vrot.lane.b32.xlu0 %v482, 16
        %v490 = vpop.permute.xlu0 %489
        %v493 = vsel %vm233, %v449, %v452
        %v494 = vsel %vm235, %v493, %v455
        %v495 = vsel %vm237, %v494, %v458
        %v496 = vsel %vm239, %v495, %v484
        %v497 = vsel %vm241, %v496, %v487
        %v498 = vsel %vm243, %v497, %v490
        %v499 = vsel %vm245, %v498, %v482
        %500 = vst [vmem:[%s415 + $0x4] sm:$0xf] %v499
        %s501 = sand.u32 %s68, 1
        %s502 = scalar_lea.sflag [#allocation4], %s501
        %s503 = sand.u32 %s68, 1
        %s504 = smul.addr %s503, 16
        %s505 = scalar_lea.vmem [#allocation5], %s504
        // Predicated region
        $region29: #{tpu_custom_call.1} parent=23 // pred_check
          %p506 = pneg %p78
        $region30: #{tpu_custom_call.1} parent=23 // pred_check_branch
          %508 = sbr.rel (%p506) target = $region32
        $region31: #{tpu_custom_call.1} parent=23 // pred_region
          %s509 = smul.u32 2, %s23
          %s511 = ssub.s32 256, 256
          %512 = vsyncadd %s502, %s511
          %s513 = smul.addr %s22, 2
          %s514 = sadd.s32 %s509, %s513
          %s515 = smul.addr %s514, 128
          %s516 = scalar_lea.hbm %s1, %s515
          %s517 = sshll.u32 %s505, 4
          %s518 = int_to_ptr.vmem [resolvable:$true] %s517
          %523 = dma.vmem_to_hbm [thread:$0]  %s518, 256, %s516, %s502, 128, 128, 8
        $region32: #{tpu_custom_call.1} parent=23 // pred_fallthru
          _
      $region24: #{tpu_custom_call.1} parent=5 // pred_fallthru
        _
      %p524 = scmp.le.s32.totalorder 2, %s13
      // Predicated region
      $region33: #{tpu_custom_call.1} parent=5 // pred_check
        %p525 = pneg %p524
      $region34: #{tpu_custom_call.1} parent=5 // pred_check_branch
        %527 = sbr.rel (%p525) target = $region36
      $region35: #{tpu_custom_call.1} parent=5 // pred_region
        %s528 = ssub.s32 %s13, 2
        // Predicated region
        $region37: #{tpu_custom_call.1} parent=35 // pred_check
          %p529 = pneg %p84
        $region38: #{tpu_custom_call.1} parent=35 // pred_check_branch
          %531 = sbr.rel (%p529) target = $region40
        $region39: #{tpu_custom_call.1} parent=35 // pred_region
          %s532 = sand.u32 %s69, 1
          %s533 = scalar_lea.sflag [#allocation4], %s532
          %s534 = sand.u32 %s69, 1
          %s535 = smul.addr %s534, 16
          %s536 = scalar_lea.vmem [#allocation5], %s535
          %537 = dma.done %s533, 256
        $region40: #{tpu_custom_call.1} parent=35 // pred_fallthru
          _
      $region36: #{tpu_custom_call.1} parent=5 // pred_fallthru
        _
    $region6: #{tpu_custom_call.1} parent=1 // loop_footer
      %s17 = sadd.s32 1, %s13
    $region7: #{tpu_custom_call.1} parent=1 // loop_footer_branch
      %12 = sbr.rel target = $region3
    $region8: #{tpu_custom_call.1} parent=1 // loop_exit
      _
    %538 = vsyncpa [#allocation3], 1
    %s539 = scalar_lea.sflag [#allocation3], 1
    %540 = vsyncpa %s539, 1
    %541 = vsyncpa [#allocation4], 1
    %s542 = scalar_lea.sflag [#allocation4], 1
    %543 = vsyncpa %s542, 1

</llo_original>
